<compile_context>
chip_gen: v7x
topology: tpu7x:2x2x1
jax: 0.10.0
libtpu: 0.0.40
codegen_flags: <defaults>
</compile_context>

<pallas_src>
import functools

import jax
import jax.numpy as jnp
from jax import lax
from jax.experimental import pallas as pl
from jax.experimental.pallas import tpu as pltpu


def _roundup(x, m):
    return -(-x // m) * m


def output_unit_kernel(x_ref, cw_ref, shift_ref, fw_ref, fb_ref, o_ref, acc_ref,
                       *, hw_total, hw_tile):
    # x_ref     : (1, C_in, hw_tile)  activation block (f32, NCHW consumed in place)
    # cw_ref    : (C_out_p, C_in)     conv weight with BN scale folded (compute dtype)
    # shift_ref : (C_out_p, 1)        folded BN shift (f32)
    # fw_ref    : (nc_p, C_out_p)     fc weight with 1/HW folded (compute dtype)
    # fb_ref    : (nc_p, 1)           fc bias (f32)
    # o_ref     : (1, nc_p, 1)        logits for this batch element (f32)
    # acc_ref   : (C_out_p, 1)        f32 pooled-sum accumulator (VMEM scratch)
    k = pl.program_id(1)

    @pl.when(k == 0)
    def _init():
        acc_ref[...] = jnp.zeros_like(acc_ref)

    # relu on the f32 input, then cast to the compute dtype for the MXU.
    x = jnp.maximum(x_ref[0], 0.0).astype(cw_ref.dtype)               # (C_in, hw_tile)
    # 1x1 conv == per-pixel matmul over channels; BN scale is folded into cw.
    h = jnp.dot(cw_ref[...], x, preferred_element_type=jnp.float32)   # (C_out_p, hw_tile)
    h = jnp.maximum(h + shift_ref[...], 0.0)                          # BN shift + relu
    if hw_total % hw_tile != 0:                                       # mask ragged HW tail
        col = k * hw_tile + lax.broadcasted_iota(jnp.int32, h.shape, 1)
        h = jnp.where(col < hw_total, h, 0.0)
    # Partial pooled sum for this HW tile (1/HW is folded into fw).
    acc_ref[...] += jnp.sum(h, axis=1, keepdims=True)

    @pl.when(k == pl.num_programs(1) - 1)
    def _finalize():
        pooled = acc_ref[...].astype(fw_ref.dtype)                    # (C_out_p, 1)
        logits = jnp.dot(fw_ref[...], pooled,
                         preferred_element_type=jnp.float32) + fb_ref[...]
        o_ref[0] = logits.astype(o_ref.dtype)                         # (nc_p, 1)


def _tile_vmem_bytes(sub, ln, dtype):
    """VMEM bytes of a 2D (sublane, lane) tile after Mosaic padding."""
    itemsize = jnp.dtype(dtype).itemsize
    packing = max(1, 4 // itemsize)
    return _roundup(max(sub, 1), 8 * packing) * _roundup(max(ln, 1), 128) * itemsize


def _vmem_capacity_bytes():
    try:
        return int(pltpu.get_tpu_info().vmem_capacity_bytes)
    except Exception:
        return 64 * 1024 * 1024  # conservative fallback: assume v7x (64 MiB / TC)


def _choose_hw_tile(hw, c_in, per_buffer_budget_bytes):
    """Largest multiple-of-128 HW tile whose f32 (C_in, tile) block stays under
    the per-buffer budget; full extent if HW already fits."""
    bytes_per_col = _roundup(c_in, 8) * 4            # f32 column, sublane-padded
    max_cols = max(128, per_buffer_budget_bytes // bytes_per_col)
    if hw <= max_cols:
        return hw                                    # single full-extent tile
    return min(hw, (max_cols // 128) * 128)


def output_unit_forward(x_nchw, params, eps=1e-5, hw_tile=None,
                        compute_dtype=jnp.bfloat16):
    """x_nchw: (N, C_in, H, W) float32.  Returns (N, n_classes) float32."""
    N, C_in, H, W = x_nchw.shape
    conv_w = params["conv_w"]                       # (C_out, C_in, 1, 1)
    gamma, beta = params["bn_gamma"], params["bn_beta"]
    rmean, rvar = params["bn_mean"], params["bn_var"]
    fc_w, fc_b = params["fc_w"], params["fc_b"]     # (n_classes, C_out), (n_classes,)
    C_out = conv_w.shape[0]
    n_classes = fc_w.shape[0]
    HW = H * W

    # ---- one-time parameter folding (O(C_in*C_out), amortized over N*HW) ----
    inv_std = 1.0 / jnp.sqrt(rvar + eps)
    scale = gamma * inv_std                                      # (C_out,)
    shift = beta - rmean * scale                                 # (C_out,)
    cw = conv_w.reshape(C_out, C_in) * scale[:, None]            # BN scale -> conv w
    fw = fc_w / float(HW)                                        # 1/HW (mean) -> fc w

    # Channel dims only need sublane (8) padding: all their block dims are
    # full-array extents and they ride the sublane axis (HW rides the lanes).
    c_out_p = _roundup(C_out, 8)
    nc_p = _roundup(n_classes, 8)

    cw_p = jnp.zeros((c_out_p, C_in), compute_dtype).at[:C_out, :].set(
        cw.astype(compute_dtype))
    shift_p = jnp.zeros((c_out_p, 1), jnp.float32).at[:C_out, 0].set(shift)
    fw_p = jnp.zeros((nc_p, c_out_p), compute_dtype).at[:n_classes, :C_out].set(
        fw.astype(compute_dtype))
    fb_p = jnp.zeros((nc_p, 1), jnp.float32).at[:n_classes, 0].set(fc_b)

    # NCHW consumed in place: (N, C_in, H, W) -> (N, C_in, HW) is a free view.
    x3 = x_nchw.reshape(N, C_in, HW)

    # ---- HW tile + vmem limit tailored to this chip's physical VMEM ----
    vmem_phys = _vmem_capacity_bytes()
    big_vmem = vmem_phys >= 100 * 1024 * 1024          # v5e / v6e (128 MiB)
    x_buf_budget = (12 if big_vmem else 5) * 1024 * 1024
    if hw_tile is None:
        hw_tile = _choose_hw_tile(HW, C_in, x_buf_budget)
    assert hw_tile == HW or hw_tile % 128 == 0, "hw_tile must be HW or a multiple of 128"
    n_hw = pl.cdiv(HW, hw_tile)

    # Real (lane/sublane-padded) VMEM footprint -> vmem_limit_bytes.
    footprint = (
        2 * _tile_vmem_bytes(C_in, hw_tile, jnp.float32)        # x (double-buffered)
        + 2 * _tile_vmem_bytes(c_out_p, C_in, compute_dtype)    # cw
        + 2 * _tile_vmem_bytes(c_out_p, 1, jnp.float32)         # shift
        + 2 * _tile_vmem_bytes(nc_p, c_out_p, compute_dtype)    # fw
        + 2 * _tile_vmem_bytes(nc_p, 1, jnp.float32)            # fb
        + 2 * _tile_vmem_bytes(nc_p, 1, jnp.float32)            # out block
        + _tile_vmem_bytes(c_out_p, 1, jnp.float32))            # acc scratch
    # TODO(synk): grid-invariant cw/shift/fw/fb could be single-buffered
    # (pipeline_mode=pl.Buffered(1)) to halve their VMEM share for large heads;
    # and pl.Buffered(3) on the x spec is worth sweeping if DMA is exposed.
    vmem_cap = int(0.75 * vmem_phys)
    vmem_limit = min(vmem_cap, max(16 * 1024 * 1024, footprint + 4 * 1024 * 1024))

    kernel = functools.partial(output_unit_kernel, hw_total=HW, hw_tile=hw_tile)

    out = pl.pallas_call(
        kernel,
        out_shape=jax.ShapeDtypeStruct((N, nc_p, 1), jnp.float32),
        grid_spec=pltpu.PrefetchScalarGridSpec(
            num_scalar_prefetch=0,
            grid=(N, n_hw),
            in_specs=[
                pl.BlockSpec((1, C_in, hw_tile), lambda i, k: (i, 0, k)),
                pl.BlockSpec((c_out_p, C_in), lambda i, k: (0, 0)),
                pl.BlockSpec((c_out_p, 1), lambda i, k: (0, 0)),
                pl.BlockSpec((nc_p, c_out_p), lambda i, k: (0, 0)),
                pl.BlockSpec((nc_p, 1), lambda i, k: (0, 0)),
            ],
            out_specs=pl.BlockSpec((1, nc_p, 1), lambda i, k: (i, 0, 0)),
            scratch_shapes=[pltpu.VMEM((c_out_p, 1), jnp.float32)],
        ),
        compiler_params=pltpu.CompilerParams(
            dimension_semantics=("parallel", "arbitrary"),
            vmem_limit_bytes=vmem_limit,
        ),
    )(x3, cw_p, shift_p, fw_p, fb_p)

    return out[:, :n_classes, 0]


def reference_forward(x_nchw, params, eps=1e-5):
    """Pure-JAX reference matching PyTorch eval-mode forward."""
    N, C_in, H, W = x_nchw.shape
    conv_w = params["conv_w"].reshape(params["conv_w"].shape[0], C_in)  # (C_out, C_in)
    out = jnp.maximum(x_nchw, 0.0)
    out = jnp.einsum("nchw,oc->nohw", out, conv_w)                      # 1x1 conv
    scale = params["bn_gamma"] / jnp.sqrt(params["bn_var"] + eps)
    shift = params["bn_beta"] - params["bn_mean"] * scale
    out = out * scale[None, :, None, None] + shift[None, :, None, None]
    out = jnp.maximum(out, 0.0)
    out = jnp.mean(out, axis=(2, 3))                                    # (N, C_out)
    out = out @ params["fc_w"].T + params["fc_b"]                       # (N, n_classes)
    return out


if __name__ == "__main__":
    # small shapes consistent with the module
    N, C_in, C_out, n_classes, H, W = 2, 4, 8, 10, 16, 16

    key = jax.random.PRNGKey(0)
    ks = jax.random.split(key, 7)
    params = {
        "conv_w": jax.random.normal(ks[0], (C_out, C_in, 1, 1), jnp.float32) * 0.1,
        "bn_gamma": jax.random.normal(ks[1], (C_out,), jnp.float32) * 0.1 + 1.0,
        "bn_beta": jax.random.normal(ks[2], (C_out,), jnp.float32) * 0.1,
        "bn_mean": jax.random.normal(ks[3], (C_out,), jnp.float32) * 0.1,
        "bn_var": jax.nn.softplus(jax.random.normal(ks[4], (C_out,), jnp.float32)) + 0.5,
        "fc_w": jax.random.normal(ks[5], (n_classes, C_out), jnp.float32) * 0.1,
        "fc_b": jax.random.normal(ks[6], (n_classes,), jnp.float32) * 0.1,
    }
    x = jax.random.normal(jax.random.PRNGKey(42), (N, C_in, H, W), jnp.float32)

    ref = reference_forward(x, params)

    # Exact f32 path, multi-tile HW reduction (exercises the pooled-sum accumulator).
    out_f32 = jax.block_until_ready(
        output_unit_forward(x, params, hw_tile=128, compute_dtype=jnp.float32))
    assert out_f32.shape == (N, n_classes)
    assert jnp.allclose(out_f32, ref, atol=1e-4, rtol=1e-4), (out_f32, ref)

    # Default bf16-streamed path (f32 accumulation).
    out_bf16 = jax.block_until_ready(output_unit_forward(x, params))
    assert out_bf16.shape == (N, n_classes)
    assert jnp.allclose(out_bf16, ref, atol=2e-2, rtol=2e-2), (out_bf16, ref)

    print("KERNEL_OK")
</pallas_src>

<mosaic_0001>
module attributes {stable_mosaic.version = 11 : i64} {
  func.func @output_unit_kernel(%arg0: i32, %arg1: i32, %arg2: memref<1x4x128xf32, #tpu.memory_space<vmem>>, %arg3: memref<8x4xf32, #tpu.memory_space<vmem>>, %arg4: memref<8x1xf32, #tpu.memory_space<vmem>>, %arg5: memref<16x8xf32, #tpu.memory_space<vmem>>, %arg6: memref<16x1xf32, #tpu.memory_space<vmem>>, %arg7: memref<1x16x1xf32, #tpu.memory_space<vmem>>, %arg8: memref<8x1xf32, #tpu.memory_space<vmem>>) attributes {dimension_semantics = [#tpu.dimension_semantics<parallel>, #tpu.dimension_semantics<arbitrary>], iteration_bounds = array<i64: 2, 2>, scalar_prefetch = 0 : i64, scratch_operands = 1 : i64, tpu.core_type = #tpu.core_type<tc>, window_params = [{transform_indices = @transform_0, window_bounds = array<i64: 1, 4, 128>}, {pipeline_mode = #tpu.pipeline_mode<synchronous>, transform_indices = @transform_1, window_bounds = array<i64: 8, 4>}, {pipeline_mode = #tpu.pipeline_mode<synchronous>, transform_indices = @transform_2, window_bounds = array<i64: 8, 1>}, {pipeline_mode = #tpu.pipeline_mode<synchronous>, transform_indices = @transform_3, window_bounds = array<i64: 16, 8>}, {pipeline_mode = #tpu.pipeline_mode<synchronous>, transform_indices = @transform_4, window_bounds = array<i64: 16, 1>}, {transform_indices = @transform_5, window_bounds = array<i64: 1, 16, 1>}]} {
    %c0_i32 = arith.constant 0 : i32
    %0 = arith.cmpi eq, %arg1, %c0_i32 : i32
    %1 = arith.extui %0 : i1 to i32
    %c0_i32_0 = arith.constant 0 : i32
    %2 = arith.cmpi ne, %1, %c0_i32_0 : i32
    scf.if %2 {
      %cst_15 = arith.constant 0.000000e+00 : f32
      %22 = vector.broadcast %cst_15 : f32 to vector<8x1xf32>
      %c0_16 = arith.constant 0 : index
      %c0_17 = arith.constant 0 : index
      %23 = vector.load %arg8[%c0_16, %c0_17] : memref<8x1xf32, #tpu.memory_space<vmem>>, vector<8x1xf32>
      tpu.vector_store %arg8[%c0_16, %c0_17], %22 {strides = array<i32>} : memref<8x1xf32, #tpu.memory_space<vmem>>, vector<8x1xf32>,
    } else {
    }
    %c0 = arith.constant 0 : index
    %c0_1 = arith.constant 0 : index
    %c0_2 = arith.constant 0 : index
    %3 = vector.load %arg2[%c0, %c0_1, %c0_2] : memref<1x4x128xf32, #tpu.memory_space<vmem>>, vector<1x4x128xf32>
    %4 = vector.shape_cast %3 : vector<1x4x128xf32> to vector<4x128xf32>
    %cst = arith.constant 0.000000e+00 : f32
    %5 = vector.broadcast %cst : f32 to vector<4x128xf32>
    %6 = arith.maximumf %4, %5 : vector<4x128xf32>
    %c0_3 = arith.constant 0 : index
    %c0_4 = arith.constant 0 : index
    %7 = vector.load %arg3[%c0_3, %c0_4] : memref<8x4xf32, #tpu.memory_space<vmem>>, vector<8x4xf32>
    %cst_5 = arith.constant dense<0.000000e+00> : vector<8x128xf32>
    %8 = tpu.matmul %7, %6, %cst_5 {dimension_numbers = #tpu.dot_dimension_numbers<[1], [0], [0], [1], [0, 0, 1, 1], [], []>} : vector<8x4xf32>, vector<4x128xf32>, vector<8x128xf32> -> vector<8x128xf32>
    %c0_6 = arith.constant 0 : index
    %c0_7 = arith.constant 0 : index
    %9 = vector.load %arg4[%c0_6, %c0_7] : memref<8x1xf32, #tpu.memory_space<vmem>>, vector<8x1xf32>
    %10 = vector.broadcast %9 : vector<8x1xf32> to vector<8x128xf32>
    %11 = arith.addf %8, %10 : vector<8x128xf32>
    %cst_8 = arith.constant 0.000000e+00 : f32
    %12 = vector.broadcast %cst_8 : f32 to vector<8x128xf32>
    %13 = arith.maximumf %11, %12 : vector<8x128xf32>
    %c0_9 = arith.constant 0 : index
    %c0_10 = arith.constant 0 : index
    %14 = vector.load %arg8[%c0_9, %c0_10] : memref<8x1xf32, #tpu.memory_space<vmem>>, vector<8x1xf32>
    %cst_11 = arith.constant dense<0.000000e+00> : vector<8xf32>
    %15 = vector.multi_reduction <add>, %13, %cst_11 [1] : vector<8x128xf32> to vector<8xf32>
    %16 = vector.shape_cast %15 : vector<8xf32> to vector<8x1xf32>
    %17 = arith.addf %14, %16 : vector<8x1xf32>
    %c0_12 = arith.constant 0 : index
    %c0_13 = arith.constant 0 : index
    %18 = vector.load %arg8[%c0_12, %c0_13] : memref<8x1xf32, #tpu.memory_space<vmem>>, vector<8x1xf32>
    tpu.vector_store %arg8[%c0_12, %c0_13], %17 {strides = array<i32>} : memref<8x1xf32, #tpu.memory_space<vmem>>, vector<8x1xf32>,
    %c1_i32 = arith.constant 1 : i32
    %19 = arith.cmpi eq, %arg1, %c1_i32 : i32
    %20 = arith.extui %19 : i1 to i32
    %c0_i32_14 = arith.constant 0 : i32
    %21 = arith.cmpi ne, %20, %c0_i32_14 : i32
    scf.if %21 {
      %c0_15 = arith.constant 0 : index
      %c0_16 = arith.constant 0 : index
      %22 = vector.load %arg8[%c0_15, %c0_16] : memref<8x1xf32, #tpu.memory_space<vmem>>, vector<8x1xf32>
      %c0_17 = arith.constant 0 : index
      %c0_18 = arith.constant 0 : index
      %23 = vector.load %arg5[%c0_17, %c0_18] : memref<16x8xf32, #tpu.memory_space<vmem>>, vector<16x8xf32>
      %cst_19 = arith.constant dense<0.000000e+00> : vector<16x1xf32>
      %24 = tpu.matmul %23, %22, %cst_19 {dimension_numbers = #tpu.dot_dimension_numbers<[1], [0], [0], [1], [0, 0, 1, 1], [], []>} : vector<16x8xf32>, vector<8x1xf32>, vector<16x1xf32> -> vector<16x1xf32>
      %c0_20 = arith.constant 0 : index
      %c0_21 = arith.constant 0 : index
      %25 = vector.load %arg6[%c0_20, %c0_21] : memref<16x1xf32, #tpu.memory_space<vmem>>, vector<16x1xf32>
      %26 = arith.addf %24, %25 : vector<16x1xf32>
      %c0_22 = arith.constant 0 : index
      %c0_23 = arith.constant 0 : index
      %c0_24 = arith.constant 0 : index
      %27 = vector.load %arg7[%c0_22, %c0_23, %c0_24] : memref<1x16x1xf32, #tpu.memory_space<vmem>>, vector<1x16x1xf32>
      %28 = vector.shape_cast %27 : vector<1x16x1xf32> to vector<16x1xf32>
      %29 = vector.shape_cast %26 : vector<16x1xf32> to vector<1x16x1xf32>
      tpu.vector_store %arg7[%c0_22, %c0_23, %c0_24], %29 {strides = array<i32>} : memref<1x16x1xf32, #tpu.memory_space<vmem>>, vector<1x16x1xf32>,
    } else {
    }
    return
  }
  func.func @transform_0(%arg0: i32, %arg1: i32) -> (i32, i32, i32) {
    %c0_i32 = arith.constant 0 : i32
    %c0_i32_0 = arith.constant 0 : i32
    return %arg0, %c0_i32, %arg1 : i32, i32, i32
  }
  func.func @transform_1(%arg0: i32, %arg1: i32) -> (i32, i32) {
    %c0_i32 = arith.constant 0 : i32
    %c0_i32_0 = arith.constant 0 : i32
    %c0_i32_1 = arith.constant 0 : i32
    return %c0_i32, %c0_i32_0 : i32, i32
  }
  func.func @transform_2(%arg0: i32, %arg1: i32) -> (i32, i32) {
    %c0_i32 = arith.constant 0 : i32
    %c0_i32_0 = arith.constant 0 : i32
    %c0_i32_1 = arith.constant 0 : i32
    return %c0_i32, %c0_i32_0 : i32, i32
  }
  func.func @transform_3(%arg0: i32, %arg1: i32) -> (i32, i32) {
    %c0_i32 = arith.constant 0 : i32
    %c0_i32_0 = arith.constant 0 : i32
    %c0_i32_1 = arith.constant 0 : i32
    return %c0_i32, %c0_i32_0 : i32, i32
  }
  func.func @transform_4(%arg0: i32, %arg1: i32) -> (i32, i32) {
    %c0_i32 = arith.constant 0 : i32
    %c0_i32_0 = arith.constant 0 : i32
    %c0_i32_1 = arith.constant 0 : i32
    return %c0_i32, %c0_i32_0 : i32, i32
  }
  func.func @transform_5(%arg0: i32, %arg1: i32) -> (i32, i32, i32) {
    %c0_i32 = arith.constant 0 : i32
    %c0_i32_0 = arith.constant 0 : i32
    %c0_i32_1 = arith.constant 0 : i32
    return %arg0, %c0_i32, %c0_i32_0 : i32, i32, i32
  }
}

</mosaic_0001>

<llo_original>
// kernel: tpu_custom_call.1
$region0: #{tpu_custom_call.1}
  #allocation0 [shape = 'u32[]', space=smem, size = 0x4, offset = 0x4, fixed_abs, tag = 'smem constant byte address 0x4 - core index']
  #allocation1 [shape = 'u32[144,128]{1,0:T(1,128)}', space=vmem, size = 0x12000, scoped, tag = 'internal scratch']
  #allocation2 [shape = 'f32[8,1]{1,0:T(8,128)}', space=vmem, size = 0x1000, scoped, tag = 'scratch operand']
  %s0 = inlined_call_operand.vmem [shape: f32[2,4,256], index: 0, kind: input, shape index: {}]
  %s1 = inlined_call_operand.vmem [shape: f32[8,4], index: 1, kind: input, shape index: {}]
  %s2 = inlined_call_operand.vmem [shape: f32[8,1], index: 2, kind: input, shape index: {}]
  %s3 = inlined_call_operand.vmem [shape: f32[16,8], index: 3, kind: input, shape index: {}]
  %s4 = inlined_call_operand.vmem [shape: f32[16,1], index: 4, kind: input, shape index: {}]
  %s5 = inlined_call_operand.vmem [shape: f32[2,16,1], index: 5, kind: output, shape index: {}]
  %s6 = sld [smem:[#allocation0]]
  $region61: #{tpu_custom_call.1} parent=0
    _
  %s8 = ssub.s32 1, %s6
  %s9 = scalar_select 0, %s8, %s6
  loop: start=0, step=1, limit=6
  $region2: #{tpu_custom_call.1} parent=0 // loop_pre_header
    _
  $region3: #{tpu_custom_call.1} parent=0 // loop_header
    %s11 = sphi 0, %s15
    %p12 = scmp.ge.s32.totalorder %s11, 6
    %s18 = sphi 0, %s30
    %s19 = sphi 0, %s26
    %s20 = sphi 0, %s18
    %s21 = sphi 0, %s19
    %s22 = sphi 0, %s20
    %s23 = sphi 0, %s21
    %s35 = sphi 0, %s37
    %s38 = sphi 0, %s35
    %s39 = sphi 0, %s38
    %s55 = sphi 0, %s39
    %s59 = sphi 0, %s59
    %s61 = sphi 0, %s59
    %s62 = sphi 0, %s61
    %s76 = sphi 0, %s62
    %s80 = sphi 0, %s80
    %s82 = sphi 0, %s80
    %s83 = sphi 0, %s82
    %s97 = sphi 0, %s83
    %s101 = sphi 0, %s101
    %s103 = sphi 0, %s101
    %s104 = sphi 0, %s103
    %s118 = sphi 0, %s104
    %s122 = sphi 0, %s122
    %s124 = sphi 0, %s122
    %s125 = sphi 0, %s124
    %s139 = sphi 0, %s125
    %s145 = sphi 0, %s147
    %s148 = sphi 0, %s145
    %s149 = sphi 0, %s148
    %s165 = sphi 0, %s149
  $region4: #{tpu_custom_call.1} parent=0 // loop_header_branch
    %14 = sbr.rel (%p12) target = $region8
  $region5: #{tpu_custom_call.1} parent=0 // loop_body
    %s16 = ssub.s32 %s11, 1
    %s17 = ssub.s32 %s11, 2
    %s24 = sadd.s32 1, %s19
    %p25 = scmp.ge.s32.totalorder %s24, 2
    %s26 = scalar_select %p25, 0, %s24
    %s27 = sadd.s32 1, %s18
    %s28 = scalar_select %p25, %s27, %s18
    %p29 = scmp.ge.s32.totalorder %s28, 2
    %s30 = scalar_select %p29, 0, %s28
    %s31 = ssub.s32 %s18, %s30
    %s32 = ssub.s32 %s19, %s26
    %s33 = sor.u32 %s31, %s32
    %p34 = scmp.eq.s32.totalorder %s33, 0
    %s36 = sadd.s32 %s35, 1
    %s37 = scalar_select %p34, %s35, %s36
    %p40 = pneg %p34
    %p41 = scmp.eq.s32.totalorder %s11, 3
    %p42 = por %p40, %p41
    %p43 = scmp.ne.s32.totalorder %s35, %s38
    %p44 = scmp.eq.s32.totalorder %s11, 0
    %p45 = por %p43, %p44
    %p46 = scmp.ne.s32.totalorder %s35, %s38
    %p47 = scmp.eq.s32.totalorder %s16, 3
    %p48 = por %p46, %p47
    %p49 = scmp.ne.s32.totalorder %s38, %s39
    %p50 = scmp.eq.s32.totalorder %s16, 0
    %p51 = por %p49, %p50
    %p52 = scmp.ne.s32.totalorder %s38, %s39
    %p53 = scmp.eq.s32.totalorder %s17, 3
    %p54 = por %p52, %p53
    %p56 = scmp.ne.s32.totalorder %s39, %s55
    %p57 = scmp.eq.s32.totalorder %s17, 0
    %p58 = por %p56, %p57
    %s60 = sadd.s32 %s59, 1
    %p63 = scmp.eq.s32.totalorder %s11, 3
    %p64 = scmp.ne.s32.totalorder %s59, %s61
    %p65 = scmp.eq.s32.totalorder %s11, 0
    %p66 = por %p64, %p65
    %p67 = scmp.ne.s32.totalorder %s59, %s61
    %p68 = scmp.eq.s32.totalorder %s16, 3
    %p69 = por %p67, %p68
    %p70 = scmp.ne.s32.totalorder %s61, %s62
    %p71 = scmp.eq.s32.totalorder %s16, 0
    %p72 = por %p70, %p71
    %p73 = scmp.ne.s32.totalorder %s61, %s62
    %p74 = scmp.eq.s32.totalorder %s17, 3
    %p75 = por %p73, %p74
    %p77 = scmp.ne.s32.totalorder %s62, %s76
    %p78 = scmp.eq.s32.totalorder %s17, 0
    %p79 = por %p77, %p78
    %s81 = sadd.s32 %s80, 1
    %p84 = scmp.eq.s32.totalorder %s11, 3
    %p85 = scmp.ne.s32.totalorder %s80, %s82
    %p86 = scmp.eq.s32.totalorder %s11, 0
    %p87 = por %p85, %p86
    %p88 = scmp.ne.s32.totalorder %s80, %s82
    %p89 = scmp.eq.s32.totalorder %s16, 3
    %p90 = por %p88, %p89
    %p91 = scmp.ne.s32.totalorder %s82, %s83
    %p92 = scmp.eq.s32.totalorder %s16, 0
    %p93 = por %p91, %p92
    %p94 = scmp.ne.s32.totalorder %s82, %s83
    %p95 = scmp.eq.s32.totalorder %s17, 3
    %p96 = por %p94, %p95
    %p98 = scmp.ne.s32.totalorder %s83, %s97
    %p99 = scmp.eq.s32.totalorder %s17, 0
    %p100 = por %p98, %p99
    %s102 = sadd.s32 %s101, 1
    %p105 = scmp.eq.s32.totalorder %s11, 3
    %p106 = scmp.ne.s32.totalorder %s101, %s103
    %p107 = scmp.eq.s32.totalorder %s11, 0
    %p108 = por %p106, %p107
    %p109 = scmp.ne.s32.totalorder %s101, %s103
    %p110 = scmp.eq.s32.totalorder %s16, 3
    %p111 = por %p109, %p110
    %p112 = scmp.ne.s32.totalorder %s103, %s104
    %p113 = scmp.eq.s32.totalorder %s16, 0
    %p114 = por %p112, %p113
    %p115 = scmp.ne.s32.totalorder %s103, %s104
    %p116 = scmp.eq.s32.totalorder %s17, 3
    %p117 = por %p115, %p116
    %p119 = scmp.ne.s32.totalorder %s104, %s118
    %p120 = scmp.eq.s32.totalorder %s17, 0
    %p121 = por %p119, %p120
    %s123 = sadd.s32 %s122, 1
    %p126 = scmp.eq.s32.totalorder %s11, 3
    %p127 = scmp.ne.s32.totalorder %s122, %s124
    %p128 = scmp.eq.s32.totalorder %s11, 0
    %p129 = por %p127, %p128
    %p130 = scmp.ne.s32.totalorder %s122, %s124
    %p131 = scmp.eq.s32.totalorder %s16, 3
    %p132 = por %p130, %p131
    %p133 = scmp.ne.s32.totalorder %s124, %s125
    %p134 = scmp.eq.s32.totalorder %s16, 0
    %p135 = por %p133, %p134
    %p136 = scmp.ne.s32.totalorder %s124, %s125
    %p137 = scmp.eq.s32.totalorder %s17, 3
    %p138 = por %p136, %p137
    %p140 = scmp.ne.s32.totalorder %s125, %s139
    %p141 = scmp.eq.s32.totalorder %s17, 0
    %p142 = por %p140, %p141
    %s143 = ssub.s32 %s18, %s30
    %p144 = scmp.eq.s32.totalorder %s143, 0
    %s146 = sadd.s32 %s145, 1
    %s147 = scalar_select %p144, %s145, %s146
    %p150 = pneg %p144
    %p151 = scmp.eq.s32.totalorder %s11, 3
    %p152 = por %p150, %p151
    %p153 = scmp.ne.s32.totalorder %s145, %s148
    %p154 = scmp.eq.s32.totalorder %s11, 0
    %p155 = por %p153, %p154
    %p156 = scmp.ne.s32.totalorder %s145, %s148
    %p157 = scmp.eq.s32.totalorder %s16, 3
    %p158 = por %p156, %p157
    %p159 = scmp.ne.s32.totalorder %s148, %s149
    %p160 = scmp.eq.s32.totalorder %s16, 0
    %p161 = por %p159, %p160
    %p162 = scmp.ne.s32.totalorder %s148, %s149
    %p163 = scmp.eq.s32.totalorder %s17, 3
    %p164 = por %p162, %p163
    %p166 = scmp.ne.s32.totalorder %s149, %s165
    %p167 = scmp.eq.s32.totalorder %s17, 0
    %p168 = por %p166, %p167
    %p169 = scmp.le.s32.totalorder 1, %s11
    %p170 = scmp.lt.s32.totalorder %s11, 5
    %p171 = pnand %p169, %p170
    %p172 = pneg %p171
    // Predicated region
    $region9: #{tpu_custom_call.1} parent=5 // pred_check
      _
    $region10: #{tpu_custom_call.1} parent=5 // pred_check_branch
      %174 = sbr.rel (%p171) target = $region12
    $region11: #{tpu_custom_call.1} parent=5 // pred_region
      %s175 = ssub.s32 %s11, 1
      // Predicated region
      $region13: #{tpu_custom_call.1} parent=11 // pred_check
        %p176 = pneg %p72
      $region14: #{tpu_custom_call.1} parent=11 // pred_check_branch
        %178 = sbr.rel (%p176) target = $region16
      $region15: #{tpu_custom_call.1} parent=11 // pred_region
        _
      $region16: #{tpu_custom_call.1} parent=11 // pred_fallthru
        _
      // Predicated region
      $region17: #{tpu_custom_call.1} parent=11 // pred_check
        %p179 = pneg %p93
      $region18: #{tpu_custom_call.1} parent=11 // pred_check_branch
        %181 = sbr.rel (%p179) target = $region20
      $region19: #{tpu_custom_call.1} parent=11 // pred_region
        _
      $region20: #{tpu_custom_call.1} parent=11 // pred_fallthru
        _
      // Predicated region
      $region21: #{tpu_custom_call.1} parent=11 // pred_check
        %p182 = pneg %p114
      $region22: #{tpu_custom_call.1} parent=11 // pred_check_branch
        %184 = sbr.rel (%p182) target = $region24
      $region23: #{tpu_custom_call.1} parent=11 // pred_region
        _
      $region24: #{tpu_custom_call.1} parent=11 // pred_fallthru
        _
      // Predicated region
      $region25: #{tpu_custom_call.1} parent=11 // pred_check
        %p185 = pneg %p135
      $region26: #{tpu_custom_call.1} parent=11 // pred_check_branch
        %187 = sbr.rel (%p185) target = $region28
      $region27: #{tpu_custom_call.1} parent=11 // pred_region
        _
      $region28: #{tpu_custom_call.1} parent=11 // pred_fallthru
        _
    $region12: #{tpu_custom_call.1} parent=5 // pred_fallthru
      _
    %p188 = scmp.lt.s32.totalorder %s11, 4
    // Predicated region
    $region29: #{tpu_custom_call.1} parent=5 // pred_check
      %p189 = pneg %p188
    $region30: #{tpu_custom_call.1} parent=5 // pred_check_branch
      %191 = sbr.rel (%p189) target = $region32
    $region31: #{tpu_custom_call.1} parent=5 // pred_region
      // Predicated region
      $region33: #{tpu_custom_call.1} parent=31 // pred_check
        %p192 = pneg %p45
      $region34: #{tpu_custom_call.1} parent=31 // pred_check_branch
        %194 = sbr.rel (%p192) target = $region36
      $region35: #{tpu_custom_call.1} parent=31 // pred_region
        %p195 = scmp.lt.s32.totalorder %s18, 1
        %s196 = scalar_select %p195, %s18, 1
        %p197 = scmp.lt.s32.totalorder %s19, 1
        %s198 = scalar_select %p197, %s19, 1
        %s199 = smul.addr %s196, 2
        %s200 = sadd.s32 %s198, %s199
        %s201 = smul.addr %s200, 4
        %s202 = scalar_lea.vmem %s0, %s201
      $region36: #{tpu_custom_call.1} parent=31 // pred_fallthru
        _
    $region32: #{tpu_custom_call.1} parent=5 // pred_fallthru
      _
    %p203 = scmp.le.s32.totalorder 1, %s11
    %p204 = scmp.lt.s32.totalorder %s11, 5
    %p205 = pnand %p203, %p204
    %p206 = pneg %p205
    // Predicated region
    $region37: #{tpu_custom_call.1} parent=5 // pred_check
      _
    $region38: #{tpu_custom_call.1} parent=5 // pred_check_branch
      %208 = sbr.rel (%p205) target = $region40
    $region39: #{tpu_custom_call.1} parent=5 // pred_region
      %s209 = ssub.s32 %s11, 1
      %p210 = scmp.lt.s32.totalorder %s20, 1
      %s211 = scalar_select %p210, %s20, 1
      %p212 = scmp.lt.s32.totalorder %s21, 1
      %s213 = scalar_select %p212, %s21, 1
      %s214 = smul.addr %s211, 2
      %s215 = sadd.s32 %s213, %s214
      %s216 = smul.addr %s215, 4
      %s217 = scalar_lea.vmem %s0, %s216
      %p218 = pneg %p51
      %p219 = pneg %p48
      %p220 = pneg %p72
      %p221 = pneg %p69
      %p222 = pneg %p93
      %p223 = pneg %p90
      %p224 = pneg %p114
      %p225 = pneg %p111
      %p226 = pneg %p135
      %p227 = pneg %p132
      %p228 = pneg %p161
      %p229 = pneg %p158
      %p230 = scmp.lt.s32.totalorder %s20, 1
      %s231 = scalar_select %p230, %s20, 1
      %s232 = smul.addr %s231, 2
      %s233 = smul.addr %s232, 8
      %s234 = scalar_lea.vmem %s5, %s233
      %p235 = scmp.lt.s32.totalorder %s20, 1
      %s236 = scalar_select %p235, %s20, 1
      %p237 = scmp.lt.s32.totalorder %s21, 1
      %s238 = scalar_select %p237, %s21, 1
      %s239 = smul.addr %s236, 2
      %s240 = sadd.s32 %s238, %s239
      %s241 = smul.addr %s240, 4
      %s242 = scalar_lea.vmem %s0, %s241
      %p243 = scmp.lt.s32.totalorder %s20, 1
      %s244 = scalar_select %p243, %s20, 1
      %s245 = smul.addr %s244, 2
      %s246 = smul.addr %s245, 8
      %s247 = scalar_lea.vmem %s5, %s246
      %p248 = scmp.eq.s32.totalorder %s21, 0
      // Predicated region
      $region41: #{tpu_custom_call.1} parent=39 // pred_check
        %p249 = pneg %p248
      $region42: #{tpu_custom_call.1} parent=39 // pred_check_branch
        %251 = sbr.rel (%p249) target = $region44
      $region43: #{tpu_custom_call.1} parent=39 // pred_region
        %vm252 = vcmask 7168
        %253 = vst.msk [vmem:[#allocation2] sm:$0xff] %vm252, 0.0
      $region44: #{tpu_custom_call.1} parent=39 // pred_fallthru
        _
      %v254 = vld [vmem:[%s242] sm:$0xf]
      %v255 = vmax.f32 %v254, 0.0
      %v256 = vld [vmem:[%s1] sm:$0xff]
      %v257 = vld [vmem:[%s2] sm:$0xff]
      %259 = vset.pattern.permute.xlu0 0
      %260 = vperm.xlu0 %259, %v257
      %v261 = vpop.permute.xlu0 %260
      %vm263 = vcmask 31744
      %v265 = vsel %vm263, %v256, 0
      %vm267 = vcmask 1043456
      %v269 = vsel %vm267, %v255, 0
      %271 = vmatprep.subr.mxu0 0.0
      %272 = vmatpush1.msra.mxu0 %v269
      %273 = vmatprep.subr.mxu0 0.0
      %274 = vmatpush1.msra.mxu0 0.0
      %275 = vmatprep.subr.mxu0 0.0
      %276 = vmatpush1.msra.mxu0 0.0
      %277 = vmatprep.subr.mxu0 0.0
      %278 = vmatpush1.msra.mxu0 0.0
      %279 = vmatprep.subr.mxu0 0.0
      %280 = vmatpush1.msra.mxu0 0.0
      %281 = vmatprep.subr.mxu0 0.0
      %282 = vmatpush1.msra.mxu0 0.0
      %283 = vmatprep.subr.mxu0 0.0
      %284 = vmatpush1.msra.mxu0 0.0
      %285 = vmatprep.subr.mxu0 0.0
      %286 = vmatpush1.msra.mxu0 0.0
      %287 = vmatprep.subr.mxu0 0.0
      %288 = vmatpush1.msra.mxu0 0.0
      %289 = vmatprep.subr.mxu0 0.0
      %290 = vmatpush1.msra.mxu0 0.0
      %291 = vmatprep.subr.mxu0 0.0
      %292 = vmatpush1.msra.mxu0 0.0
      %293 = vmatprep.subr.mxu0 0.0
      %294 = vmatpush1.msra.mxu0 0.0
      %295 = vmatprep.subr.mxu0 0.0
      %296 = vmatpush1.msra.mxu0 0.0
      %297 = vmatprep.subr.mxu0 0.0
      %298 = vmatpush1.msra.mxu0 0.0
      %299 = vmatprep.subr.mxu0 0.0
      %300 = vmatpush1.msra.mxu0 0.0
      %301 = vmatprep.subr.mxu0 0.0
      %302 = vmatpush1.msra.mxu0 0.0
      %303 = vmatprep.subr.mxu0 0.0
      %304 = vmatpush1.msra.mxu0 0.0
      %305 = vmatprep.subr.mxu0 0.0
      %306 = vmatpush1.msra.mxu0 0.0
      %307 = vmatprep.subr.mxu0 0.0
      %308 = vmatpush1.msra.mxu0 0.0
      %309 = vmatprep.subr.mxu0 0.0
      %310 = vmatpush1.msra.mxu0 0.0
      %311 = vmatprep.subr.mxu0 0.0
      %312 = vmatpush1.msra.mxu0 0.0
      %313 = vmatprep.subr.mxu0 0.0
      %314 = vmatpush1.msra.mxu0 0.0
      %315 = vmatprep.subr.mxu0 0.0
      %316 = vmatpush1.msra.mxu0 0.0
      %317 = vmatprep.subr.mxu0 0.0
      %318 = vmatpush1.msra.mxu0 0.0
      %319 = vmatprep.subr.mxu0 0.0
      %320 = vmatpush1.msra.mxu0 0.0
      %321 = vmatprep.subr.mxu0 0.0
      %322 = vmatpush1.msra.mxu0 0.0
      %323 = vmatprep.subr.mxu0 0.0
      %324 = vmatpush1.msra.mxu0 0.0
      %325 = vmatprep.subr.mxu0 0.0
      %326 = vmatpush1.msra.mxu0 0.0
      %327 = vmatprep.subr.mxu0 0.0
      %328 = vmatpush1.msra.mxu0 0.0
      %329 = vmatprep.subr.mxu0 0.0
      %330 = vmatpush1.msra.mxu0 0.0
      %331 = vmatprep.subr.mxu0 0.0
      %332 = vmatpush1.msra.mxu0 0.0
      %333 = vmatprep.subr.mxu0 0.0
      %334 = vmatpush1.msra.mxu0 0.0
      %335 = vmatprep.mubr.f32.mxu0 0.0
      %336 = vmatmul.mubr.f32.gmra.mrb[0].mxu0 %v265
      %v337 = vpop.f32.mrb[0].mxu0
      %v338 = vadd.f32 %v261, %v337
      %v339 = vpop.f32.mrb[0].mxu0
      %340 = vdwg.mxu0
      %v341 = vmax.f32 %v338, 0.0
      %v342 = vld [vmem:[#allocation2] sm:$0xff]
      %343 = vadd.xlane.f32.xlu0 %v341
      %v344 = vpop.xlane.xlu0 %343
      %v345 = vadd.f32 %v342, %v344
      %vm346 = vcmask 7168
      %347 = vst.msk [vmem:[#allocation2] sm:$0xff] %vm346, %v345
      %p348 = scmp.eq.s32.totalorder %s21, 1
      // Predicated region
      $region45: #{tpu_custom_call.1} parent=39 // pred_check
        %p349 = pneg %p348
      $region46: #{tpu_custom_call.1} parent=39 // pred_check_branch
        %351 = sbr.rel (%p349) target = $region48
      $region47: #{tpu_custom_call.1} parent=39 // pred_region
        %v352 = vld [vmem:[#allocation2] sm:$0xff]
        %v353 = vld [vmem:[%s3] sm:$0xff]
        %v354 = vld [vmem:[%s3 + $0x8] sm:$0xff]
        %v355 = vld [vmem:[%s4] sm:$0xff]
        %v356 = vld [vmem:[%s4 + $0x8] sm:$0xff]
        %vm357 = vcmask 64512
        %v359 = vsel %vm357, %v353, 0
        %v362 = vsel %vm357, %v354, 0
        %364 = vmatprep.subr.mxu0 0.0
        %365 = vmatpush1.msra.mxu0 %v352
        %366 = vmatprep.subr.mxu0 0.0
        %367 = vmatpush1.msra.mxu0 0.0
        %368 = vmatprep.subr.mxu0 0.0
        %369 = vmatpush1.msra.mxu0 0.0
        %370 = vmatprep.subr.mxu0 0.0
        %371 = vmatpush1.msra.mxu0 0.0
        %372 = vmatprep.subr.mxu0 0.0
        %373 = vmatpush1.msra.mxu0 0.0
        %374 = vmatprep.subr.mxu0 0.0
        %375 = vmatpush1.msra.mxu0 0.0
        %376 = vmatprep.subr.mxu0 0.0
        %377 = vmatpush1.msra.mxu0 0.0
        %378 = vmatprep.subr.mxu0 0.0
        %379 = vmatpush1.msra.mxu0 0.0
        %380 = vmatprep.subr.mxu0 0.0
        %381 = vmatpush1.msra.mxu0 0.0
        %382 = vmatprep.subr.mxu0 0.0
        %383 = vmatpush1.msra.mxu0 0.0
        %384 = vmatprep.subr.mxu0 0.0
        %385 = vmatpush1.msra.mxu0 0.0
        %386 = vmatprep.subr.mxu0 0.0
        %387 = vmatpush1.msra.mxu0 0.0
        %388 = vmatprep.subr.mxu0 0.0
        %389 = vmatpush1.msra.mxu0 0.0
        %390 = vmatprep.subr.mxu0 0.0
        %391 = vmatpush1.msra.mxu0 0.0
        %392 = vmatprep.subr.mxu0 0.0
        %393 = vmatpush1.msra.mxu0 0.0
        %394 = vmatprep.subr.mxu0 0.0
        %395 = vmatpush1.msra.mxu0 0.0
        %396 = vmatprep.subr.mxu0 0.0
        %397 = vmatpush1.msra.mxu0 0.0
        %398 = vmatprep.subr.mxu0 0.0
        %399 = vmatpush1.msra.mxu0 0.0
        %400 = vmatprep.subr.mxu0 0.0
        %401 = vmatpush1.msra.mxu0 0.0
        %402 = vmatprep.subr.mxu0 0.0
        %403 = vmatpush1.msra.mxu0 0.0
        %404 = vmatprep.subr.mxu0 0.0
        %405 = vmatpush1.msra.mxu0 0.0
        %406 = vmatprep.subr.mxu0 0.0
        %407 = vmatpush1.msra.mxu0 0.0
        %408 = vmatprep.subr.mxu0 0.0
        %409 = vmatpush1.msra.mxu0 0.0
        %410 = vmatprep.subr.mxu0 0.0
        %411 = vmatpush1.msra.mxu0 0.0
        %412 = vmatprep.subr.mxu0 0.0
        %413 = vmatpush1.msra.mxu0 0.0
        %414 = vmatprep.subr.mxu0 0.0
        %415 = vmatpush1.msra.mxu0 0.0
        %416 = vmatprep.subr.mxu0 0.0
        %417 = vmatpush1.msra.mxu0 0.0
        %418 = vmatprep.subr.mxu0 0.0
        %419 = vmatpush1.msra.mxu0 0.0
        %420 = vmatprep.subr.mxu0 0.0
        %421 = vmatpush1.msra.mxu0 0.0
        %422 = vmatprep.subr.mxu0 0.0
        %423 = vmatpush1.msra.mxu0 0.0
        %424 = vmatprep.subr.mxu0 0.0
        %425 = vmatpush1.msra.mxu0 0.0
        %426 = vmatprep.subr.mxu0 0.0
        %427 = vmatpush1.msra.mxu0 0.0
        %428 = vmatprep.mubr.f32.mxu0 0.0
        %429 = vmatmul.mubr.f32.gmra.mrb[0].mxu0 %v359
        %v430 = vpop.f32.mrb[0].mxu0
        %v431 = vadd.f32 %v355, %v430
        %v432 = vpop.f32.mrb[0].mxu0
        %433 = vmatprep.mubr.f32.mxu0 0.0
        %434 = vmatmul.mubr.f32.gmra.mrb[0].mxu0 %v362
        %v435 = vpop.f32.mrb[0].mxu0
        %v436 = vadd.f32 %v356, %v435
        %v437 = vpop.f32.mrb[0].mxu0
        %438 = vdwg.mxu0
        %439 = vst.msk [vmem:[%s247] sm:$0xff] %vm346, %v431
        %440 = vst.msk [vmem:[%s247 + $0x8] sm:$0xff] %vm346, %v436
      $region48: #{tpu_custom_call.1} parent=39 // pred_fallthru
        _
      %p441 = scmp.lt.s32.totalorder %s20, 1
      %s442 = scalar_select %p441, %s20, 1
      %s443 = smul.addr %s442, 2
      %s444 = smul.addr %s443, 8
      %s445 = scalar_lea.vmem %s5, %s444
      // Predicated region
      $region49: #{tpu_custom_call.1} parent=39 // pred_check
        %p446 = pneg %p158
      $region50: #{tpu_custom_call.1} parent=39 // pred_check_branch
        %448 = sbr.rel (%p446) target = $region52
      $region51: #{tpu_custom_call.1} parent=39 // pred_region
        _
      $region52: #{tpu_custom_call.1} parent=39 // pred_fallthru
        _
    $region40: #{tpu_custom_call.1} parent=5 // pred_fallthru
      _
    %p449 = scmp.le.s32.totalorder 2, %s11
    // Predicated region
    $region53: #{tpu_custom_call.1} parent=5 // pred_check
      %p450 = pneg %p449
    $region54: #{tpu_custom_call.1} parent=5 // pred_check_branch
      %452 = sbr.rel (%p450) target = $region56
    $region55: #{tpu_custom_call.1} parent=5 // pred_region
      %s453 = ssub.s32 %s11, 2
      // Predicated region
      $region57: #{tpu_custom_call.1} parent=55 // pred_check
        %p454 = pneg %p164
      $region58: #{tpu_custom_call.1} parent=55 // pred_check_branch
        %456 = sbr.rel (%p454) target = $region60
      $region59: #{tpu_custom_call.1} parent=55 // pred_region
        %p457 = scmp.lt.s32.totalorder %s22, 1
        %s458 = scalar_select %p457, %s22, 1
        %s459 = smul.addr %s458, 2
        %s460 = smul.addr %s459, 8
        %s461 = scalar_lea.vmem %s5, %s460
      $region60: #{tpu_custom_call.1} parent=55 // pred_fallthru
        _
    $region56: #{tpu_custom_call.1} parent=5 // pred_fallthru
      _
  $region6: #{tpu_custom_call.1} parent=0 // loop_footer
    %s15 = sadd.s32 1, %s11
  $region7: #{tpu_custom_call.1} parent=0 // loop_footer_branch
    %10 = sbr.rel target = $region3
  $region8: #{tpu_custom_call.1} parent=0 // loop_exit
    _

</llo_original>
